<compile_context>
chip_gen: v5e
topology: v5e:2x2
jax: 0.10.0
libtpu: 0.0.40
codegen_flags: <defaults>
</compile_context>

<pallas_src>
import jax
import jax.numpy as jnp
from jax.experimental import pallas as pl
from jax.experimental.pallas import tpu as pltpu


def _round_up(x, m):
    return ((x + m - 1) // m) * m


def _cdiv(a, b):
    return -(-a // b)


def mlp_kernel(x_ref, w0_ref, wh_ref, w4_ref, bh_ref, b4_ref, out_ref):
    """Fused 5-layer MLP on one batch tile: (Linear+ReLU) x4 then Linear."""

    def linear(h, w, b):
        # Cast activations to the weight dtype (f32 or bf16) so the MXU runs
        # its native path; always accumulate in f32.  Bias stays f32 (v5e's
        # VPU has no bf16 ALUs).
        return jnp.dot(h.astype(w.dtype), w,
                       preferred_element_type=jnp.float32) + b

    h = jnp.maximum(linear(x_ref[...], w0_ref[...], bh_ref[0]), 0.0)
    for i in range(3):  # three identical hidden layers, statically unrolled
        h = jnp.maximum(linear(h, wh_ref[i], bh_ref[i + 1]), 0.0)
    # Output layer (no activation). astype is a no-op when out_dtype is f32.
    out_ref[...] = linear(h, w4_ref[...], b4_ref[...]).astype(out_ref.dtype)


def pack_params(params, compute_dtype=jnp.bfloat16):
    """Pad/stack the 5 (W, b) pairs into lane-dense arrays.

    params[i] = (W_i of shape (in, out), b_i of shape (1, out)).
    Returns (w0p, wh, w4p, bhp, b4p, P_h, P_out).  Zero-padding keeps the
    math identical: padded activation columns stay exactly 0 through ReLU.
    """
    num_inputs, hidden = params[0][0].shape
    num_actions = params[-1][0].shape[1]
    P_h = _round_up(hidden, 128)       # hidden lane width
    P_out = _round_up(num_actions, 128)  # output lane width (decoupled)

    w0, b0 = params[0]
    w4, b4 = params[4]

    w0p = jnp.zeros((num_inputs, P_h), jnp.float32).at[:, :hidden].set(w0)
    wh = jnp.stack([
        jnp.zeros((P_h, P_h), jnp.float32).at[:hidden, :hidden].set(params[i][0])
        for i in range(1, 4)
    ])
    w4p = jnp.zeros((P_h, P_out), jnp.float32).at[:hidden, :num_actions].set(w4)

    bhp = jnp.zeros((4, 1, P_h), jnp.float32)
    bhp = bhp.at[0, :, :hidden].set(b0)
    for i in range(1, 4):
        bhp = bhp.at[i, :, :hidden].set(params[i][1])
    b4p = jnp.zeros((1, P_out), jnp.float32).at[:, :num_actions].set(b4)

    # Weights stored in the compute dtype (halves weight DMA bytes in bf16);
    # biases stay f32 for the VPU add.
    return (w0p.astype(compute_dtype), wh.astype(compute_dtype),
            w4p.astype(compute_dtype), bhp, b4p, P_h, P_out)


def neural_net_forward(x, params, *, block_batch=512,
                       compute_dtype=jnp.bfloat16, out_dtype=jnp.float32):
    """x: (batch, num_inputs) f32; params: list of (W=(in,out), b=(1,out))."""
    batch, num_inputs = x.shape
    num_actions = params[-1][0].shape[1]

    w0p, wh, w4p, bhp, b4p, P_h, P_out = pack_params(params, compute_dtype)

    # ---- Batch tiling: minimize padding, guarantee work for 2 TCs (v7x) ----
    n_blk = _cdiv(batch, block_batch)
    bm = _round_up(_cdiv(batch, n_blk), 8)
    if n_blk == 1 and bm >= 16:
        # Split into >= 2 blocks so ("parallel",) can shard across v7x's two
        # TensorCores.  Weights are tiny; duplicating them per TC is free.
        n_blk = 2
        bm = _round_up(_cdiv(batch, n_blk), 8)
    batch_p = n_blk * bm
    if batch_p != batch:
        x = jnp.pad(x, ((0, batch_p - batch), (0, 0)))
    grid = (n_blk,)

    # ---- VMEM budget: default double-buffering of every operand ----
    w_item = jnp.dtype(compute_dtype).itemsize
    weight_bytes = (num_inputs * P_h + 3 * P_h * P_h + P_h * P_out) * w_item
    bias_bytes = (4 * P_h + P_out) * 4
    io_bytes = bm * num_inputs * 4 + bm * P_out * jnp.dtype(out_dtype).itemsize
    act_bytes = 2 * bm * P_h * 4  # live f32 activations inside the kernel
    vmem_est = 2 * (weight_bytes + bias_bytes + io_bytes) + act_bytes
    # Cap at 64 MiB (v7x physical per-TC VMEM); floor at the common 16 MiB
    # scoped default so tiny nets behave as before.
    vmem_limit = max(16 << 20, min(vmem_est + (4 << 20), 64 << 20))

    bytes_accessed = (x.nbytes + w0p.nbytes + wh.nbytes + w4p.nbytes
                      + bhp.nbytes + b4p.nbytes
                      + batch_p * P_out * jnp.dtype(out_dtype).itemsize)
    cost = pl.CostEstimate(
        flops=2 * batch_p * (num_inputs * P_h + 3 * P_h * P_h + P_h * P_out),
        transcendentals=0,
        bytes_accessed=bytes_accessed)

    out = pl.pallas_call(
        mlp_kernel,
        out_shape=jax.ShapeDtypeStruct((batch_p, P_out), out_dtype),
        grid=grid,
        in_specs=[
            pl.BlockSpec((bm, num_inputs), lambda i: (i, 0)),    # x tile
            pl.BlockSpec((num_inputs, P_h), lambda i: (0, 0)),   # W0 (resident)
            pl.BlockSpec((3, P_h, P_h), lambda i: (0, 0, 0)),    # W1..W3
            pl.BlockSpec((P_h, P_out), lambda i: (0, 0)),        # W4
            pl.BlockSpec((4, 1, P_h), lambda i: (0, 0, 0)),      # hidden biases
            pl.BlockSpec((1, P_out), lambda i: (0, 0)),          # output bias
        ],
        out_specs=pl.BlockSpec((bm, P_out), lambda i: (i, 0)),
        compiler_params=pltpu.CompilerParams(
            dimension_semantics=("parallel",),   # batch axis -> 2 TCs on v7x
            vmem_limit_bytes=int(vmem_limit)),
        cost_estimate=cost,
    )(x, w0p, wh, w4p, bhp, b4p)

    return out[:batch, :num_actions]


def init_params(key, num_inputs, hidden_size, num_actions):
    """Deterministic init mimicking nn.Linear's U(-1/sqrt(fan_in), 1/sqrt(fan_in))."""
    dims = [num_inputs, hidden_size, hidden_size, hidden_size, hidden_size,
            num_actions]
    params = []
    for i in range(5):
        fan_in, fan_out = dims[i], dims[i + 1]
        key, kw, kb = jax.random.split(key, 3)
        bound = 1.0 / jnp.sqrt(jnp.float32(fan_in))
        w = jax.random.uniform(kw, (fan_in, fan_out), jnp.float32,
                               minval=-bound, maxval=bound)
        b = jax.random.uniform(kb, (1, fan_out), jnp.float32,
                               minval=-bound, maxval=bound)
        params.append((w, b))
    return params


def reference_forward(x, params):
    h = x
    for i, (w, b) in enumerate(params):
        h = h @ w + b
        if i < len(params) - 1:
            h = jnp.maximum(h, 0.0)
    return h


if __name__ == "__main__":
    # Small shapes consistent with the module: a DQN MLP over a flat state.
    batch = 8
    num_inputs = 16
    hidden_size = 32
    num_actions = 4

    key = jax.random.PRNGKey(0)
    key, kx = jax.random.split(key)
    x = jax.random.normal(kx, (batch, num_inputs), jnp.float32)
    key, kparams = jax.random.split(key)
    params = init_params(kparams, num_inputs, hidden_size, num_actions)

    ref = reference_forward(x, params)

    # Default path: bf16 weights on the MXU, f32 accumulation and biases.
    out = jax.block_until_ready(neural_net_forward(x, params))
    assert out.shape == (batch, num_actions)
    assert jnp.allclose(out, ref, atol=5e-2, rtol=5e-2)

    # Strict-parity f32 path (matches the PyTorch module semantics closely).
    out_f32 = jax.block_until_ready(
        neural_net_forward(x, params, compute_dtype=jnp.float32))
    assert jnp.allclose(out_f32, ref, atol=1e-5, rtol=1e-5)

    # Larger batch: exercises minimal-padding tiling (bm=152, batch_p=304,
    # grid=(2,)) instead of padding 300 -> 512.
    key, kx2 = jax.random.split(key)
    x_big = jax.random.normal(kx2, (300, num_inputs), jnp.float32)
    out_big = jax.block_until_ready(
        neural_net_forward(x_big, params, compute_dtype=jnp.float32))
    ref_big = reference_forward(x_big, params)
    assert out_big.shape == (300, num_actions)
    assert jnp.allclose(out_big, ref_big, atol=1e-4, rtol=1e-4)

    print("KERNEL_OK")
</pallas_src>

<mosaic_0001>
module attributes {stable_mosaic.version = 11 : i64} {
  func.func @mlp_kernel(%arg0: i32, %arg1: memref<8x16xf32, #tpu.memory_space<vmem>>, %arg2: memref<16x128xbf16, #tpu.memory_space<vmem>>, %arg3: memref<3x128x128xbf16, #tpu.memory_space<vmem>>, %arg4: memref<128x128xbf16, #tpu.memory_space<vmem>>, %arg5: memref<4x1x128xf32, #tpu.memory_space<vmem>>, %arg6: memref<1x128xf32, #tpu.memory_space<vmem>>, %arg7: memref<8x128xf32, #tpu.memory_space<vmem>>) attributes {dimension_semantics = [#tpu.dimension_semantics<parallel>], iteration_bounds = array<i64: 1>, scalar_prefetch = 0 : i64, scratch_operands = 0 : i64, tpu.core_type = #tpu.core_type<tc>, window_params = [{transform_indices = @transform_0, window_bounds = array<i64: 8, 16>}, {pipeline_mode = #tpu.pipeline_mode<synchronous>, transform_indices = @transform_1, window_bounds = array<i64: 16, 128>}, {pipeline_mode = #tpu.pipeline_mode<synchronous>, transform_indices = @transform_2, window_bounds = array<i64: 3, 128, 128>}, {pipeline_mode = #tpu.pipeline_mode<synchronous>, transform_indices = @transform_3, window_bounds = array<i64: 128, 128>}, {pipeline_mode = #tpu.pipeline_mode<synchronous>, transform_indices = @transform_4, window_bounds = array<i64: 4, 1, 128>}, {pipeline_mode = #tpu.pipeline_mode<synchronous>, transform_indices = @transform_5, window_bounds = array<i64: 1, 128>}, {transform_indices = @transform_6, window_bounds = array<i64: 8, 128>}]} {
    %c0 = arith.constant 0 : index
    %c0_0 = arith.constant 0 : index
    %0 = vector.load %arg1[%c0, %c0_0] : memref<8x16xf32, #tpu.memory_space<vmem>>, vector<8x16xf32>
    %c0_1 = arith.constant 0 : index
    %c0_2 = arith.constant 0 : index
    %1 = vector.load %arg2[%c0_1, %c0_2] : memref<16x128xbf16, #tpu.memory_space<vmem>>, vector<16x128xbf16>
    %c0_3 = arith.constant 0 : index
    %c0_4 = arith.constant 0 : index
    %c0_5 = arith.constant 0 : index
    %2 = vector.load %arg5[%c0_3, %c0_4, %c0_5] : memref<4x1x128xf32, #tpu.memory_space<vmem>>, vector<1x1x128xf32>
    %3 = vector.shape_cast %2 : vector<1x1x128xf32> to vector<1x128xf32>
    %4 = arith.truncf %0 : vector<8x16xf32> to vector<8x16xbf16>
    %cst = arith.constant dense<0.000000e+00> : vector<8x128xf32>
    %5 = tpu.matmul %4, %1, %cst {dimension_numbers = #tpu.dot_dimension_numbers<[1], [0], [0], [1], [0, 0, 1, 1], [], []>} : vector<8x16xbf16>, vector<16x128xbf16>, vector<8x128xf32> -> vector<8x128xf32>
    %6 = vector.broadcast %3 : vector<1x128xf32> to vector<8x128xf32>
    %7 = arith.addf %5, %6 : vector<8x128xf32>
    %cst_6 = arith.constant 0.000000e+00 : f32
    %8 = vector.broadcast %cst_6 : f32 to vector<8x128xf32>
    %9 = arith.maximumf %7, %8 : vector<8x128xf32>
    %c0_7 = arith.constant 0 : index
    %c0_8 = arith.constant 0 : index
    %c0_9 = arith.constant 0 : index
    %10 = vector.load %arg3[%c0_7, %c0_8, %c0_9] : memref<3x128x128xbf16, #tpu.memory_space<vmem>>, vector<1x128x128xbf16>
    %11 = vector.shape_cast %10 : vector<1x128x128xbf16> to vector<128x128xbf16>
    %c1 = arith.constant 1 : index
    %c0_10 = arith.constant 0 : index
    %c0_11 = arith.constant 0 : index
    %12 = vector.load %arg5[%c1, %c0_10, %c0_11] : memref<4x1x128xf32, #tpu.memory_space<vmem>>, vector<1x1x128xf32>
    %13 = vector.shape_cast %12 : vector<1x1x128xf32> to vector<1x128xf32>
    %14 = arith.truncf %9 : vector<8x128xf32> to vector<8x128xbf16>
    %cst_12 = arith.constant dense<0.000000e+00> : vector<8x128xf32>
    %15 = tpu.matmul %14, %11, %cst_12 {dimension_numbers = #tpu.dot_dimension_numbers<[1], [0], [0], [1], [0, 0, 1, 1], [], []>} : vector<8x128xbf16>, vector<128x128xbf16>, vector<8x128xf32> -> vector<8x128xf32>
    %16 = vector.broadcast %13 : vector<1x128xf32> to vector<8x128xf32>
    %17 = arith.addf %15, %16 : vector<8x128xf32>
    %cst_13 = arith.constant 0.000000e+00 : f32
    %18 = vector.broadcast %cst_13 : f32 to vector<8x128xf32>
    %19 = arith.maximumf %17, %18 : vector<8x128xf32>
    %c1_14 = arith.constant 1 : index
    %c0_15 = arith.constant 0 : index
    %c0_16 = arith.constant 0 : index
    %20 = vector.load %arg3[%c1_14, %c0_15, %c0_16] : memref<3x128x128xbf16, #tpu.memory_space<vmem>>, vector<1x128x128xbf16>
    %21 = vector.shape_cast %20 : vector<1x128x128xbf16> to vector<128x128xbf16>
    %c2 = arith.constant 2 : index
    %c0_17 = arith.constant 0 : index
    %c0_18 = arith.constant 0 : index
    %22 = vector.load %arg5[%c2, %c0_17, %c0_18] : memref<4x1x128xf32, #tpu.memory_space<vmem>>, vector<1x1x128xf32>
    %23 = vector.shape_cast %22 : vector<1x1x128xf32> to vector<1x128xf32>
    %24 = arith.truncf %19 : vector<8x128xf32> to vector<8x128xbf16>
    %cst_19 = arith.constant dense<0.000000e+00> : vector<8x128xf32>
    %25 = tpu.matmul %24, %21, %cst_19 {dimension_numbers = #tpu.dot_dimension_numbers<[1], [0], [0], [1], [0, 0, 1, 1], [], []>} : vector<8x128xbf16>, vector<128x128xbf16>, vector<8x128xf32> -> vector<8x128xf32>
    %26 = vector.broadcast %23 : vector<1x128xf32> to vector<8x128xf32>
    %27 = arith.addf %25, %26 : vector<8x128xf32>
    %cst_20 = arith.constant 0.000000e+00 : f32
    %28 = vector.broadcast %cst_20 : f32 to vector<8x128xf32>
    %29 = arith.maximumf %27, %28 : vector<8x128xf32>
    %c2_21 = arith.constant 2 : index
    %c0_22 = arith.constant 0 : index
    %c0_23 = arith.constant 0 : index
    %30 = vector.load %arg3[%c2_21, %c0_22, %c0_23] : memref<3x128x128xbf16, #tpu.memory_space<vmem>>, vector<1x128x128xbf16>
    %31 = vector.shape_cast %30 : vector<1x128x128xbf16> to vector<128x128xbf16>
    %c3 = arith.constant 3 : index
    %c0_24 = arith.constant 0 : index
    %c0_25 = arith.constant 0 : index
    %32 = vector.load %arg5[%c3, %c0_24, %c0_25] : memref<4x1x128xf32, #tpu.memory_space<vmem>>, vector<1x1x128xf32>
    %33 = vector.shape_cast %32 : vector<1x1x128xf32> to vector<1x128xf32>
    %34 = arith.truncf %29 : vector<8x128xf32> to vector<8x128xbf16>
    %cst_26 = arith.constant dense<0.000000e+00> : vector<8x128xf32>
    %35 = tpu.matmul %34, %31, %cst_26 {dimension_numbers = #tpu.dot_dimension_numbers<[1], [0], [0], [1], [0, 0, 1, 1], [], []>} : vector<8x128xbf16>, vector<128x128xbf16>, vector<8x128xf32> -> vector<8x128xf32>
    %36 = vector.broadcast %33 : vector<1x128xf32> to vector<8x128xf32>
    %37 = arith.addf %35, %36 : vector<8x128xf32>
    %cst_27 = arith.constant 0.000000e+00 : f32
    %38 = vector.broadcast %cst_27 : f32 to vector<8x128xf32>
    %39 = arith.maximumf %37, %38 : vector<8x128xf32>
    %c0_28 = arith.constant 0 : index
    %c0_29 = arith.constant 0 : index
    %40 = vector.load %arg4[%c0_28, %c0_29] : memref<128x128xbf16, #tpu.memory_space<vmem>>, vector<128x128xbf16>
    %c0_30 = arith.constant 0 : index
    %c0_31 = arith.constant 0 : index
    %41 = vector.load %arg6[%c0_30, %c0_31] : memref<1x128xf32, #tpu.memory_space<vmem>>, vector<1x128xf32>
    %42 = arith.truncf %39 : vector<8x128xf32> to vector<8x128xbf16>
    %cst_32 = arith.constant dense<0.000000e+00> : vector<8x128xf32>
    %43 = tpu.matmul %42, %40, %cst_32 {dimension_numbers = #tpu.dot_dimension_numbers<[1], [0], [0], [1], [0, 0, 1, 1], [], []>} : vector<8x128xbf16>, vector<128x128xbf16>, vector<8x128xf32> -> vector<8x128xf32>
    %44 = vector.broadcast %41 : vector<1x128xf32> to vector<8x128xf32>
    %45 = arith.addf %43, %44 : vector<8x128xf32>
    %c0_33 = arith.constant 0 : index
    %c0_34 = arith.constant 0 : index
    %46 = vector.load %arg7[%c0_33, %c0_34] : memref<8x128xf32, #tpu.memory_space<vmem>>, vector<8x128xf32>
    tpu.vector_store %arg7[%c0_33, %c0_34], %45 {strides = array<i32>} : memref<8x128xf32, #tpu.memory_space<vmem>>, vector<8x128xf32>,
    return
  }
  func.func @transform_0(%arg0: i32) -> (i32, i32) {
    %c0_i32 = arith.constant 0 : i32
    %c0_i32_0 = arith.constant 0 : i32
    return %arg0, %c0_i32 : i32, i32
  }
  func.func @transform_1(%arg0: i32) -> (i32, i32) {
    %c0_i32 = arith.constant 0 : i32
    %c0_i32_0 = arith.constant 0 : i32
    %c0_i32_1 = arith.constant 0 : i32
    return %c0_i32, %c0_i32_0 : i32, i32
  }
  func.func @transform_2(%arg0: i32) -> (i32, i32, i32) {
    %c0_i32 = arith.constant 0 : i32
    %c0_i32_0 = arith.constant 0 : i32
    %c0_i32_1 = arith.constant 0 : i32
    %c0_i32_2 = arith.constant 0 : i32
    return %c0_i32, %c0_i32_0, %c0_i32_1 : i32, i32, i32
  }
  func.func @transform_3(%arg0: i32) -> (i32, i32) {
    %c0_i32 = arith.constant 0 : i32
    %c0_i32_0 = arith.constant 0 : i32
    %c0_i32_1 = arith.constant 0 : i32
    return %c0_i32, %c0_i32_0 : i32, i32
  }
  func.func @transform_4(%arg0: i32) -> (i32, i32, i32) {
    %c0_i32 = arith.constant 0 : i32
    %c0_i32_0 = arith.constant 0 : i32
    %c0_i32_1 = arith.constant 0 : i32
    %c0_i32_2 = arith.constant 0 : i32
    return %c0_i32, %c0_i32_0, %c0_i32_1 : i32, i32, i32
  }
  func.func @transform_5(%arg0: i32) -> (i32, i32) {
    %c0_i32 = arith.constant 0 : i32
    %c0_i32_0 = arith.constant 0 : i32
    %c0_i32_1 = arith.constant 0 : i32
    return %c0_i32, %c0_i32_0 : i32, i32
  }
  func.func @transform_6(%arg0: i32) -> (i32, i32) {
    %c0_i32 = arith.constant 0 : i32
    %c0_i32_0 = arith.constant 0 : i32
    return %arg0, %c0_i32 : i32, i32
  }
}

</mosaic_0001>

<llo_original>
// kernel: tpu_custom_call.1
$region0: #{tpu_custom_call.1}
  #allocation0 [shape = 'u32[]', space=smem, size = 0x4, offset = 0x4, fixed_abs, tag = 'smem constant byte address 0x4 - core index']
  #allocation1 [shape = 'u32[72,128]{1,0:T(1,128)}', space=vmem, size = 0x9000, scoped, tag = 'internal scratch']
  %s0 = inlined_call_operand.hbm [shape: f32[8,16], index: 0, kind: input, shape index: {}]
  %s1 = inlined_call_operand.hbm [shape: bf16[16,128], index: 1, kind: input, shape index: {}]
  %s2 = inlined_call_operand.hbm [shape: bf16[3,128,128], index: 2, kind: input, shape index: {}]
  %s3 = inlined_call_operand.hbm [shape: bf16[128,128], index: 3, kind: input, shape index: {}]
  %s4 = inlined_call_operand.hbm [shape: f32[4,1,128], index: 4, kind: input, shape index: {}]
  %s5 = inlined_call_operand.vmem [shape: f32[1,128], index: 5, kind: input, shape index: {}]
  %s6 = inlined_call_operand.hbm [shape: f32[8,128], index: 6, kind: output, shape index: {}]
  %s7 = sld [smem:[#allocation0]]
  $region54: #{tpu_custom_call.1} parent=0
    _
  %s9 = ssub.s32 1, %s7
  %s10 = scalar_select 0, %s9, %s7
  $region1: #{tpu_custom_call.1} parent=0
    #allocation2 [shape = 'u8[4096]{0}', space=vmem, size = 0x1000, scoped, tag = 'input window, operand 0, single buffered']
    #allocation3 [shape = 's32[1]{0}', space=sflag, size = 0x4, scoped, tag = 'scoped memory for tpu_custom_call.1']
    #allocation4 [shape = 's32[1]{0}', space=sflag, size = 0x4, scoped, tag = 'scoped memory for tpu_custom_call.1']
    #allocation5 [shape = 'u8[4096]{0}', space=vmem, size = 0x1000, scoped, tag = 'input window, operand 1, single buffered']
    #allocation6 [shape = 's32[1]{0}', space=sflag, size = 0x4, scoped, tag = 'scoped memory for tpu_custom_call.1']
    #allocation7 [shape = 'u8[98304]{0}', space=vmem, size = 0x18000, scoped, tag = 'input window, operand 2, single buffered']
    #allocation8 [shape = 'u8[32768]{0}', space=vmem, size = 0x8000, scoped, tag = 'input window, operand 3, single buffered']
    #allocation9 [shape = 's32[1]{0}', space=sflag, size = 0x4, scoped, tag = 'scoped memory for tpu_custom_call.1']
    #allocation10 [shape = 'u8[2048]{0}', space=vmem, size = 0x800, scoped, tag = 'input window, operand 4, single buffered']
    #allocation11 [shape = 'u8[4096]{0}', space=vmem, size = 0x1000, scoped, tag = 'output window, operand 0, single buffered']
    %11 = vsyncpa [#allocation3], 0
    %12 = vsyncpa [#allocation6], 0
    %13 = vsyncpa [#allocation9], 0
    %14 = vsyncpa [#allocation4], 0
    // Predicated region
    $region2: #{tpu_custom_call.1} parent=1 // pred_check
      _
    $region3: #{tpu_custom_call.1} parent=1 // pred_check_branch
      %16 = sbr.rel (0) target = $region5
    $region4: #{tpu_custom_call.1} parent=1 // pred_region
      %18 = vsyncadd [#allocation3], 0
      %s20 = sshll.u32 %s0, 4
      %s21 = int_to_ptr.hbm [resolvable:$true] %s20
      %s22 = sshll.u32 [#allocation2], 4
      %s23 = int_to_ptr.vmem [resolvable:$true] %s22
      %25 = dma.hbm_to_vmem [thread:$0]  %s21, 128, %s23, [#allocation3]
    $region5: #{tpu_custom_call.1} parent=1 // pred_fallthru
      _
    // Predicated region
    $region6: #{tpu_custom_call.1} parent=1 // pred_check
      _
    $region7: #{tpu_custom_call.1} parent=1 // pred_check_branch
      %27 = sbr.rel (0) target = $region9
    $region8: #{tpu_custom_call.1} parent=1 // pred_region
      %29 = vsyncadd [#allocation6], 0
      %s30 = sshll.u32 %s1, 4
      %s31 = int_to_ptr.hbm [resolvable:$true] %s30
      %s32 = sshll.u32 [#allocation5], 4
      %s33 = int_to_ptr.vmem [resolvable:$true] %s32
      %38 = dma.hbm_to_vmem [thread:$0]  %s31, 128, %s33, [#allocation6], 64, 64, 4
    $region9: #{tpu_custom_call.1} parent=1 // pred_fallthru
      _
    // Predicated region
    $region10: #{tpu_custom_call.1} parent=1 // pred_check
      _
    $region11: #{tpu_custom_call.1} parent=1 // pred_check_branch
      %40 = sbr.rel (0) target = $region13
    $region12: #{tpu_custom_call.1} parent=1 // pred_region
      %42 = vsyncadd [#allocation6], 0
      %s43 = sshll.u32 %s2, 4
      %s44 = int_to_ptr.hbm [resolvable:$true] %s43
      %s45 = sshll.u32 [#allocation7], 4
      %s46 = int_to_ptr.vmem [resolvable:$true] %s45
      %51 = dma.hbm_to_vmem [thread:$0]  %s44, 3072, %s46, [#allocation6], 64, 64, 4
    $region13: #{tpu_custom_call.1} parent=1 // pred_fallthru
      _
    // Predicated region
    $region14: #{tpu_custom_call.1} parent=1 // pred_check
      _
    $region15: #{tpu_custom_call.1} parent=1 // pred_check_branch
      %53 = sbr.rel (0) target = $region17
    $region16: #{tpu_custom_call.1} parent=1 // pred_region
      %55 = vsyncadd [#allocation9], 0
      %s56 = sshll.u32 %s3, 4
      %s57 = int_to_ptr.hbm [resolvable:$true] %s56
      %s58 = sshll.u32 [#allocation8], 4
      %s59 = int_to_ptr.vmem [resolvable:$true] %s58
      %64 = dma.hbm_to_vmem [thread:$0]  %s57, 1024, %s59, [#allocation9], 64, 64, 4
    $region17: #{tpu_custom_call.1} parent=1 // pred_fallthru
      _
    // Predicated region
    $region18: #{tpu_custom_call.1} parent=1 // pred_check
      _
    $region19: #{tpu_custom_call.1} parent=1 // pred_check_branch
      %66 = sbr.rel (0) target = $region21
    $region20: #{tpu_custom_call.1} parent=1 // pred_region
      %68 = vsyncadd [#allocation9], 0
      %s69 = sshll.u32 %s4, 4
      %s70 = int_to_ptr.hbm [resolvable:$true] %s69
      %s71 = sshll.u32 [#allocation10], 4
      %s72 = int_to_ptr.vmem [resolvable:$true] %s71
      %77 = dma.hbm_to_vmem [thread:$0]  %s70, 64, %s72, [#allocation9], 16, 16, 1
    $region21: #{tpu_custom_call.1} parent=1 // pred_fallthru
      _
    // Predicated region
    $region22: #{tpu_custom_call.1} parent=1 // pred_check
      _
    $region23: #{tpu_custom_call.1} parent=1 // pred_check_branch
      %79 = sbr.rel (0) target = $region25
    $region24: #{tpu_custom_call.1} parent=1 // pred_region
      _
    $region25: #{tpu_custom_call.1} parent=1 // pred_fallthru
      _
    // Predicated region
    $region26: #{tpu_custom_call.1} parent=1 // pred_check
      _
    $region27: #{tpu_custom_call.1} parent=1 // pred_check_branch
      %81 = sbr.rel (0) target = $region29
    $region28: #{tpu_custom_call.1} parent=1 // pred_region
      %83 = dma.done [#allocation3], 128
    $region29: #{tpu_custom_call.1} parent=1 // pred_fallthru
      _
    // Predicated region
    $region30: #{tpu_custom_call.1} parent=1 // pred_check
      _
    $region31: #{tpu_custom_call.1} parent=1 // pred_check_branch
      %85 = sbr.rel (0) target = $region33
    $region32: #{tpu_custom_call.1} parent=1 // pred_region
      %87 = dma.done [#allocation6], 128
    $region33: #{tpu_custom_call.1} parent=1 // pred_fallthru
      _
    // Predicated region
    $region34: #{tpu_custom_call.1} parent=1 // pred_check
      _
    $region35: #{tpu_custom_call.1} parent=1 // pred_check_branch
      %89 = sbr.rel (0) target = $region37
    $region36: #{tpu_custom_call.1} parent=1 // pred_region
      %91 = dma.done [#allocation6], 3072
    $region37: #{tpu_custom_call.1} parent=1 // pred_fallthru
      _
    // Predicated region
    $region38: #{tpu_custom_call.1} parent=1 // pred_check
      _
    $region39: #{tpu_custom_call.1} parent=1 // pred_check_branch
      %93 = sbr.rel (0) target = $region41
    $region40: #{tpu_custom_call.1} parent=1 // pred_region
      %95 = dma.done [#allocation9], 1024
    $region41: #{tpu_custom_call.1} parent=1 // pred_fallthru
      _
    // Predicated region
    $region42: #{tpu_custom_call.1} parent=1 // pred_check
      _
    $region43: #{tpu_custom_call.1} parent=1 // pred_check_branch
      %97 = sbr.rel (0) target = $region45
    $region44: #{tpu_custom_call.1} parent=1 // pred_region
      %99 = dma.done [#allocation9], 64
    $region45: #{tpu_custom_call.1} parent=1 // pred_fallthru
      _
    %v101 = vld [vmem:[#allocation2] sm:$0xff]
    %v102 = vld [vmem:[#allocation5] sm:$0xf]
    %v103 = vld [vmem:[#allocation5 + $0x4] sm:$0xf]
    %v104 = vld [vmem:[#allocation10] sm:$0x1]
    %v105 = vpack.c.bf16 %v101, %v101
    %v107 = vperm.slane %v104, 0
    %v111 = vunpack.c.l.b16 %v102
    %v112 = vunpack.c.l.b16 %v103
    %v113 = vpack.c.b16 %v112, %v111
    %vm115 = vcmask 130048
    %v117 = vsel %vm115, %v105, 0
    %119 = vmatpush.bf16.msra.mxu0 0
    %120 = vmatpush.bf16.msra.mxu0 0
    %121 = vmatpush.bf16.msra.mxu0 0
    %122 = vmatpush.bf16.msra.mxu0 0
    %123 = vmatpush.bf16.msra.mxu0 0
    %124 = vmatpush.bf16.msra.mxu0 0
    %125 = vmatpush.bf16.msra.mxu0 0
    %126 = vmatpush.bf16.msra.mxu0 %v113
    %127 = vmatmul.bf16.gmra.mxu0 %v117
    %v128 = vpop.f32.mrf.mxu0
    %v129 = vadd.f32 %v107, %v128
    %v130 = vpop.f32.mrf.mxu0
    %131 = vdwg.mxu0
    %v132 = vmax.f32 %v129, 0.0
    %v133 = vld [vmem:[#allocation7] sm:$0xf]
    %v134 = vld [vmem:[#allocation7 + $0x4] sm:$0xf]
    %v135 = vld [vmem:[#allocation7 + $0x8] sm:$0xf]
    %v136 = vld [vmem:[#allocation7 + $0xc] sm:$0xf]
    %v137 = vld [vmem:[#allocation7 + $0x10] sm:$0xf]
    %v138 = vld [vmem:[#allocation7 + $0x14] sm:$0xf]
    %v139 = vld [vmem:[#allocation7 + $0x18] sm:$0xf]
    %v140 = vld [vmem:[#allocation7 + $0x1c] sm:$0xf]
    %v141 = vld [vmem:[#allocation7 + $0x20] sm:$0xf]
    %v142 = vld [vmem:[#allocation7 + $0x24] sm:$0xf]
    %v143 = vld [vmem:[#allocation7 + $0x28] sm:$0xf]
    %v144 = vld [vmem:[#allocation7 + $0x2c] sm:$0xf]
    %v145 = vld [vmem:[#allocation7 + $0x30] sm:$0xf]
    %v146 = vld [vmem:[#allocation7 + $0x34] sm:$0xf]
    %v147 = vld [vmem:[#allocation7 + $0x38] sm:$0xf]
    %v148 = vld [vmem:[#allocation7 + $0x3c] sm:$0xf]
    %s149 = scalar_lea.vmem [#allocation10], 1
    %v150 = vld [vmem:[%s149] sm:$0x1]
    %v151 = vpack.c.bf16 %v132, %v132
    %v153 = vperm.slane %v150, 0
    %v171 = vunpack.c.l.b16 %v133
    %v172 = vunpack.c.l.b16 %v134
    %v173 = vunpack.c.l.b16 %v135
    %v174 = vunpack.c.l.b16 %v136
    %v175 = vunpack.c.l.b16 %v137
    %v176 = vunpack.c.l.b16 %v138
    %v177 = vunpack.c.l.b16 %v139
    %v178 = vunpack.c.l.b16 %v140
    %v179 = vunpack.c.l.b16 %v141
    %v180 = vunpack.c.l.b16 %v142
    %v181 = vunpack.c.l.b16 %v143
    %v182 = vunpack.c.l.b16 %v144
    %v183 = vunpack.c.l.b16 %v145
    %v184 = vunpack.c.l.b16 %v146
    %v185 = vunpack.c.l.b16 %v147
    %v186 = vunpack.c.l.b16 %v148
    %v187 = vpack.c.b16 %v172, %v171
    %v188 = vpack.c.b16 %v174, %v173
    %v189 = vpack.c.b16 %v176, %v175
    %v190 = vpack.c.b16 %v178, %v177
    %v191 = vpack.c.b16 %v180, %v179
    %v192 = vpack.c.b16 %v182, %v181
    %v193 = vpack.c.b16 %v184, %v183
    %v194 = vpack.c.b16 %v186, %v185
    %203 = vmatpush.bf16.msra.mxu0 %v194
    %204 = vmatpush.bf16.msra.mxu0 %v193
    %205 = vmatpush.bf16.msra.mxu0 %v192
    %206 = vmatpush.bf16.msra.mxu0 %v191
    %207 = vmatpush.bf16.msra.mxu0 %v190
    %208 = vmatpush.bf16.msra.mxu0 %v189
    %209 = vmatpush.bf16.msra.mxu0 %v188
    %210 = vmatpush.bf16.msra.mxu0 %v187
    %211 = vmatmul.bf16.gmra.mxu0 %v151
    %v212 = vpop.f32.mrf.mxu0
    %v213 = vadd.f32 %v153, %v212
    %v214 = vpop.f32.mrf.mxu0
    %215 = vdwg.mxu0
    %v216 = vmax.f32 %v213, 0.0
    %s217 = scalar_lea.vmem [#allocation7], 64
    %v218 = vld [vmem:[%s217] sm:$0xf]
    %v219 = vld [vmem:[%s217 + $0x4] sm:$0xf]
    %v220 = vld [vmem:[%s217 + $0x8] sm:$0xf]
    %v221 = vld [vmem:[%s217 + $0xc] sm:$0xf]
    %v222 = vld [vmem:[%s217 + $0x10] sm:$0xf]
    %v223 = vld [vmem:[%s217 + $0x14] sm:$0xf]
    %v224 = vld [vmem:[%s217 + $0x18] sm:$0xf]
    %v225 = vld [vmem:[%s217 + $0x1c] sm:$0xf]
    %v226 = vld [vmem:[%s217 + $0x20] sm:$0xf]
    %v227 = vld [vmem:[%s217 + $0x24] sm:$0xf]
    %v228 = vld [vmem:[%s217 + $0x28] sm:$0xf]
    %v229 = vld [vmem:[%s217 + $0x2c] sm:$0xf]
    %v230 = vld [vmem:[%s217 + $0x30] sm:$0xf]
    %v231 = vld [vmem:[%s217 + $0x34] sm:$0xf]
    %v232 = vld [vmem:[%s217 + $0x38] sm:$0xf]
    %v233 = vld [vmem:[%s217 + $0x3c] sm:$0xf]
    %s234 = scalar_lea.vmem [#allocation10], 2
    %v235 = vld [vmem:[%s234] sm:$0x1]
    %v236 = vpack.c.bf16 %v216, %v216
    %v238 = vperm.slane %v235, 0
    %v256 = vunpack.c.l.b16 %v218
    %v257 = vunpack.c.l.b16 %v219
    %v258 = vunpack.c.l.b16 %v220
    %v259 = vunpack.c.l.b16 %v221
    %v260 = vunpack.c.l.b16 %v222
    %v261 = vunpack.c.l.b16 %v223
    %v262 = vunpack.c.l.b16 %v224
    %v263 = vunpack.c.l.b16 %v225
    %v264 = vunpack.c.l.b16 %v226
    %v265 = vunpack.c.l.b16 %v227
    %v266 = vunpack.c.l.b16 %v228
    %v267 = vunpack.c.l.b16 %v229
    %v268 = vunpack.c.l.b16 %v230
    %v269 = vunpack.c.l.b16 %v231
    %v270 = vunpack.c.l.b16 %v232
    %v271 = vunpack.c.l.b16 %v233
    %v272 = vpack.c.b16 %v257, %v256
    %v273 = vpack.c.b16 %v259, %v258
    %v274 = vpack.c.b16 %v261, %v260
    %v275 = vpack.c.b16 %v263, %v262
    %v276 = vpack.c.b16 %v265, %v264
    %v277 = vpack.c.b16 %v267, %v266
    %v278 = vpack.c.b16 %v269, %v268
    %v279 = vpack.c.b16 %v271, %v270
    %288 = vmatpush.bf16.msra.mxu0 %v279
    %289 = vmatpush.bf16.msra.mxu0 %v278
    %290 = vmatpush.bf16.msra.mxu0 %v277
    %291 = vmatpush.bf16.msra.mxu0 %v276
    %292 = vmatpush.bf16.msra.mxu0 %v275
    %293 = vmatpush.bf16.msra.mxu0 %v274
    %294 = vmatpush.bf16.msra.mxu0 %v273
    %295 = vmatpush.bf16.msra.mxu0 %v272
    %296 = vmatmul.bf16.gmra.mxu0 %v236
    %v297 = vpop.f32.mrf.mxu0
    %v298 = vadd.f32 %v238, %v297
    %v299 = vpop.f32.mrf.mxu0
    %300 = vdwg.mxu0
    %v301 = vmax.f32 %v298, 0.0
    %s302 = scalar_lea.vmem [#allocation7], 128
    %v303 = vld [vmem:[%s302] sm:$0xf]
    %v304 = vld [vmem:[%s302 + $0x4] sm:$0xf]
    %v305 = vld [vmem:[%s302 + $0x8] sm:$0xf]
    %v306 = vld [vmem:[%s302 + $0xc] sm:$0xf]
    %v307 = vld [vmem:[%s302 + $0x10] sm:$0xf]
    %v308 = vld [vmem:[%s302 + $0x14] sm:$0xf]
    %v309 = vld [vmem:[%s302 + $0x18] sm:$0xf]
    %v310 = vld [vmem:[%s302 + $0x1c] sm:$0xf]
    %v311 = vld [vmem:[%s302 + $0x20] sm:$0xf]
    %v312 = vld [vmem:[%s302 + $0x24] sm:$0xf]
    %v313 = vld [vmem:[%s302 + $0x28] sm:$0xf]
    %v314 = vld [vmem:[%s302 + $0x2c] sm:$0xf]
    %v315 = vld [vmem:[%s302 + $0x30] sm:$0xf]
    %v316 = vld [vmem:[%s302 + $0x34] sm:$0xf]
    %v317 = vld [vmem:[%s302 + $0x38] sm:$0xf]
    %v318 = vld [vmem:[%s302 + $0x3c] sm:$0xf]
    %s319 = scalar_lea.vmem [#allocation10], 3
    %v320 = vld [vmem:[%s319] sm:$0x1]
    %v321 = vpack.c.bf16 %v301, %v301
    %v323 = vperm.slane %v320, 0
    %v341 = vunpack.c.l.b16 %v303
    %v342 = vunpack.c.l.b16 %v304
    %v343 = vunpack.c.l.b16 %v305
    %v344 = vunpack.c.l.b16 %v306
    %v345 = vunpack.c.l.b16 %v307
    %v346 = vunpack.c.l.b16 %v308
    %v347 = vunpack.c.l.b16 %v309
    %v348 = vunpack.c.l.b16 %v310
    %v349 = vunpack.c.l.b16 %v311
    %v350 = vunpack.c.l.b16 %v312
    %v351 = vunpack.c.l.b16 %v313
    %v352 = vunpack.c.l.b16 %v314
    %v353 = vunpack.c.l.b16 %v315
    %v354 = vunpack.c.l.b16 %v316
    %v355 = vunpack.c.l.b16 %v317
    %v356 = vunpack.c.l.b16 %v318
    %v357 = vpack.c.b16 %v342, %v341
    %v358 = vpack.c.b16 %v344, %v343
    %v359 = vpack.c.b16 %v346, %v345
    %v360 = vpack.c.b16 %v348, %v347
    %v361 = vpack.c.b16 %v350, %v349
    %v362 = vpack.c.b16 %v352, %v351
    %v363 = vpack.c.b16 %v354, %v353
    %v364 = vpack.c.b16 %v356, %v355
    %373 = vmatpush.bf16.msra.mxu0 %v364
    %374 = vmatpush.bf16.msra.mxu0 %v363
    %375 = vmatpush.bf16.msra.mxu0 %v362
    %376 = vmatpush.bf16.msra.mxu0 %v361
    %377 = vmatpush.bf16.msra.mxu0 %v360
    %378 = vmatpush.bf16.msra.mxu0 %v359
    %379 = vmatpush.bf16.msra.mxu0 %v358
    %380 = vmatpush.bf16.msra.mxu0 %v357
    %381 = vmatmul.bf16.gmra.mxu0 %v321
    %v382 = vpop.f32.mrf.mxu0
    %v383 = vadd.f32 %v323, %v382
    %v384 = vpop.f32.mrf.mxu0
    %385 = vdwg.mxu0
    %v386 = vmax.f32 %v383, 0.0
    %v387 = vld [vmem:[#allocation8] sm:$0xf]
    %v388 = vld [vmem:[#allocation8 + $0x4] sm:$0xf]
    %v389 = vld [vmem:[#allocation8 + $0x8] sm:$0xf]
    %v390 = vld [vmem:[#allocation8 + $0xc] sm:$0xf]
    %v391 = vld [vmem:[#allocation8 + $0x10] sm:$0xf]
    %v392 = vld [vmem:[#allocation8 + $0x14] sm:$0xf]
    %v393 = vld [vmem:[#allocation8 + $0x18] sm:$0xf]
    %v394 = vld [vmem:[#allocation8 + $0x1c] sm:$0xf]
    %v395 = vld [vmem:[#allocation8 + $0x20] sm:$0xf]
    %v396 = vld [vmem:[#allocation8 + $0x24] sm:$0xf]
    %v397 = vld [vmem:[#allocation8 + $0x28] sm:$0xf]
    %v398 = vld [vmem:[#allocation8 + $0x2c] sm:$0xf]
    %v399 = vld [vmem:[#allocation8 + $0x30] sm:$0xf]
    %v400 = vld [vmem:[#allocation8 + $0x34] sm:$0xf]
    %v401 = vld [vmem:[#allocation8 + $0x38] sm:$0xf]
    %v402 = vld [vmem:[#allocation8 + $0x3c] sm:$0xf]
    %v403 = vld [vmem:[%s5] sm:$0x1]
    %v404 = vpack.c.bf16 %v386, %v386
    %v406 = vperm.slane %v403, 0
    %v424 = vunpack.c.l.b16 %v387
    %v425 = vunpack.c.l.b16 %v388
    %v426 = vunpack.c.l.b16 %v389
    %v427 = vunpack.c.l.b16 %v390
    %v428 = vunpack.c.l.b16 %v391
    %v429 = vunpack.c.l.b16 %v392
    %v430 = vunpack.c.l.b16 %v393
    %v431 = vunpack.c.l.b16 %v394
    %v432 = vunpack.c.l.b16 %v395
    %v433 = vunpack.c.l.b16 %v396
    %v434 = vunpack.c.l.b16 %v397
    %v435 = vunpack.c.l.b16 %v398
    %v436 = vunpack.c.l.b16 %v399
    %v437 = vunpack.c.l.b16 %v400
    %v438 = vunpack.c.l.b16 %v401
    %v439 = vunpack.c.l.b16 %v402
    %v440 = vpack.c.b16 %v425, %v424
    %v441 = vpack.c.b16 %v427, %v426
    %v442 = vpack.c.b16 %v429, %v428
    %v443 = vpack.c.b16 %v431, %v430
    %v444 = vpack.c.b16 %v433, %v432
    %v445 = vpack.c.b16 %v435, %v434
    %v446 = vpack.c.b16 %v437, %v436
    %v447 = vpack.c.b16 %v439, %v438
    %456 = vmatpush.bf16.msra.mxu0 %v447
    %457 = vmatpush.bf16.msra.mxu0 %v446
    %458 = vmatpush.bf16.msra.mxu0 %v445
    %459 = vmatpush.bf16.msra.mxu0 %v444
    %460 = vmatpush.bf16.msra.mxu0 %v443
    %461 = vmatpush.bf16.msra.mxu0 %v442
    %462 = vmatpush.bf16.msra.mxu0 %v441
    %463 = vmatpush.bf16.msra.mxu0 %v440
    %464 = vmatmul.bf16.gmra.mxu0 %v404
    %v465 = vpop.f32.mrf.mxu0
    %v466 = vadd.f32 %v406, %v465
    %v467 = vpop.f32.mrf.mxu0
    %468 = vdwg.mxu0
    %469 = vst [vmem:[#allocation11] sm:$0xff] %v466
    // Predicated region
    $region46: #{tpu_custom_call.1} parent=1 // pred_check
      _
    $region47: #{tpu_custom_call.1} parent=1 // pred_check_branch
      %471 = sbr.rel (0) target = $region49
    $region48: #{tpu_custom_call.1} parent=1 // pred_region
      %473 = vsyncadd [#allocation4], 0
      %s475 = sshll.u32 [#allocation11], 4
      %s476 = int_to_ptr.vmem [resolvable:$true] %s475
      %s477 = sshll.u32 %s6, 4
      %s478 = int_to_ptr.hbm [resolvable:$true] %s477
      %480 = dma.vmem_to_hbm [thread:$0]  %s476, 128, %s478, [#allocation4]
    $region49: #{tpu_custom_call.1} parent=1 // pred_fallthru
      _
    // Predicated region
    $region50: #{tpu_custom_call.1} parent=1 // pred_check
      _
    $region51: #{tpu_custom_call.1} parent=1 // pred_check_branch
      %482 = sbr.rel (0) target = $region53
    $region52: #{tpu_custom_call.1} parent=1 // pred_region
      %484 = dma.done [#allocation4], 128
    $region53: #{tpu_custom_call.1} parent=1 // pred_fallthru
      _
    %485 = vsyncpa [#allocation3], 1
    %486 = vsyncpa [#allocation6], 1
    %487 = vsyncpa [#allocation9], 1
    %488 = vsyncpa [#allocation4], 1

</llo_original>
